<compile_context>
chip_gen: v6e
topology: v6e:2x2x1
jax: 0.10.0
libtpu: 0.0.40
codegen_flags: <defaults>
</compile_context>

<pallas_src>
import functools

import jax
import jax.numpy as jnp
from jax.experimental import pallas as pl
from jax.experimental.pallas import tpu as pltpu


# ---------------------------------------------------------------------------
# Kernels
# ---------------------------------------------------------------------------
def _qkv_proj_kernel(x_ref, w_ref, q_ref, k_ref, v_ref):
    # x: (tm, C), w: (C, 3*HD) -> q/k/v: (tm, HD).  qkv_bias=False -> no bias DMA/add.
    acc = jnp.dot(x_ref[...], w_ref[...], preferred_element_type=jnp.float32)
    hd_total = q_ref.shape[-1]
    q_ref[...] = acc[:, :hd_total].astype(q_ref.dtype)
    k_ref[...] = acc[:, hd_total:2 * hd_total].astype(k_ref.dtype)
    v_ref[...] = acc[:, 2 * hd_total:].astype(v_ref.dtype)


def _proj_kernel(x_ref, w_ref, b_ref, o_ref):
    # x: (tm, HD), w: (HD, C), b: (1, C) -> o: (tm, C)
    acc = jnp.dot(x_ref[...], w_ref[...], preferred_element_type=jnp.float32)
    o_ref[...] = (acc + b_ref[...]).astype(o_ref.dtype)


def _attn_kernel(q_ref, k_ref, v_ref, o_ref, *, scale, num_heads, head_dim):
    # One batch element per grid step; q/k/v/o blocks are (N, H*hd) (lane-dense).
    N, HD = q_ref.shape
    H, hd = num_heads, head_dim

    # (N, H*hd) -> (H, N, hd): heads become the batch dim of batched matmuls.
    q = jnp.transpose(q_ref[...].reshape(N, H, hd), (1, 0, 2))
    k = jnp.transpose(k_ref[...].reshape(N, H, hd), (1, 0, 2))
    v = jnp.transpose(v_ref[...].reshape(N, H, hd), (1, 0, 2))

    # Scores: contract head_dim directly (no materialized k.T), f32 accumulation.
    s = jnp.einsum("hqd,hkd->hqk", q, k,
                   preferred_element_type=jnp.float32) * scale       # (H, N, N)

    # Numerically-stable softmax in f32; approx reciprocal runs on the EUP slot.
    s = s - jnp.max(s, axis=-1, keepdims=True)
    p = jnp.exp(s)
    p = p * pl.reciprocal(jnp.sum(p, axis=-1, keepdims=True), approx=True)

    out = jnp.einsum("hqk,hkd->hqd", p.astype(v.dtype), v,
                     preferred_element_type=jnp.float32)              # (H, N, hd)
    out = jnp.transpose(out, (1, 0, 2)).reshape(N, HD)                # (N, H*hd)
    o_ref[...] = out.astype(o_ref.dtype)


# ---------------------------------------------------------------------------
# Wrappers around pallas_call
# ---------------------------------------------------------------------------
_ROW_TILE = 256  # rows per projection tile (feedback: tm = 256-512)


def _pick_tm(M):
    return M if M <= _ROW_TILE else _ROW_TILE


def _qkv_proj(x, w_qkv):
    # x: (M, C), w_qkv: (C, 3*HD) -> (q, k, v), each (M, HD)
    M, C = x.shape
    HD3 = w_qkv.shape[1]
    HD = HD3 // 3
    tm = _pick_tm(M)
    grid = (pl.cdiv(M, tm),)
    return pl.pallas_call(
        _qkv_proj_kernel,
        out_shape=tuple(jax.ShapeDtypeStruct((M, HD), x.dtype) for _ in range(3)),
        grid=grid,
        in_specs=[
            pl.BlockSpec((tm, C), lambda i: (i, 0)),
            pl.BlockSpec((C, HD3), lambda i: (0, 0)),   # weight stays resident
        ],
        out_specs=tuple(pl.BlockSpec((tm, HD), lambda i: (i, 0)) for _ in range(3)),
        compiler_params=pltpu.CompilerParams(dimension_semantics=("parallel",)),
    )(x, w_qkv)


def _out_proj(x, w, b):
    # x: (M, HD), w: (HD, C), b: (C,) -> (M, C)
    M, HD = x.shape
    C = w.shape[1]
    tm = _pick_tm(M)
    grid = (pl.cdiv(M, tm),)
    return pl.pallas_call(
        _proj_kernel,
        out_shape=jax.ShapeDtypeStruct((M, C), x.dtype),
        grid=grid,
        in_specs=[
            pl.BlockSpec((tm, HD), lambda i: (i, 0)),
            pl.BlockSpec((HD, C), lambda i: (0, 0)),
            pl.BlockSpec((1, C), lambda i: (0, 0)),
        ],
        out_specs=pl.BlockSpec((tm, C), lambda i: (i, 0)),
        compiler_params=pltpu.CompilerParams(dimension_semantics=("parallel",)),
    )(x, w, b.reshape(1, C))


def _mhsa(q, k, v, *, scale, num_heads, head_dim):
    # q/k/v: (B, N, H*hd) -> (B, N, H*hd); grid over batch, all heads per step.
    B, N, HD = q.shape
    kernel = functools.partial(
        _attn_kernel, scale=scale, num_heads=num_heads, head_dim=head_dim)
    spec = pl.BlockSpec((None, N, HD), lambda b: (b, 0, 0))  # leading dim squeezed
    return pl.pallas_call(
        kernel,
        out_shape=jax.ShapeDtypeStruct((B, N, HD), q.dtype),
        grid=(B,),
        in_specs=[spec, spec, spec],
        out_specs=spec,
        compiler_params=pltpu.CompilerParams(dimension_semantics=("parallel",)),
    )(q, k, v)


def attention_forward(x, params, *, num_heads, head_dim, qk_scale=None):
    """Pallas implementation of Attention.forward (padding_mask=None)."""
    B, N, C = x.shape
    H, hd = num_heads, head_dim
    HD = H * hd
    scale = qk_scale if qk_scale is not None else head_dim ** (-0.5)
    M = B * N

    # qkv projection (bias=False).  Outputs are already split per q/k/v in
    # (B, N, H*hd) layout -> no wrapper transpose needed.
    q, k, v = _qkv_proj(x.reshape(M, C), params["w_qkv"])
    q = q.reshape(B, N, HD)
    k = k.reshape(B, N, HD)
    v = v.reshape(B, N, HD)

    # Multi-head attention; output comes back directly in (B, N, H*hd) order.
    out = _mhsa(q, k, v, scale=scale, num_heads=H, head_dim=hd)

    # Output projection (has bias).
    y = _out_proj(out.reshape(M, HD), params["w_proj"], params["b_proj"])
    return y.reshape(B, N, C)


# ---------------------------------------------------------------------------
# Pure-JAX reference (mirrors the PyTorch forward exactly)
# ---------------------------------------------------------------------------
def attention_reference(x, params, *, num_heads, head_dim):
    B, N, C = x.shape
    H, hd = num_heads, head_dim
    scale = head_dim ** (-0.5)
    qkv = x @ params["w_qkv"]                            # qkv_bias=False
    qkv = qkv.reshape(B, N, 3, H, hd).transpose(2, 0, 3, 1, 4)
    q, k, v = qkv[0], qkv[1], qkv[2]                     # (B, H, N, hd)
    attn = (q * scale) @ jnp.swapaxes(k, -2, -1)         # (B, H, N, N)
    attn = jax.nn.softmax(attn, axis=-1)
    out = attn @ v                                       # (B, H, N, hd)
    out = jnp.transpose(out, (0, 2, 1, 3)).reshape(B, N, H * hd)
    return out @ params["w_proj"] + params["b_proj"]


# ---------------------------------------------------------------------------
# Main
# ---------------------------------------------------------------------------
if __name__ == "__main__":
    B, N, dim = 2, 8, 32
    num_heads = 4
    head_dim = dim // num_heads                          # 8

    key = jax.random.PRNGKey(0)
    k_x, k_wqkv, k_wproj, k_bproj = jax.random.split(key, 4)

    x = jax.random.normal(k_x, (B, N, dim), dtype=jnp.float32)

    inner = num_heads * head_dim
    params = {
        # qkv Linear(dim, 3*inner, bias=False): weight stored (in, out)
        "w_qkv": jax.random.normal(k_wqkv, (dim, 3 * inner), jnp.float32) * 0.05,
        # proj Linear(inner, dim, bias=True)
        "w_proj": jax.random.normal(k_wproj, (inner, dim), jnp.float32) * 0.05,
        "b_proj": jax.random.normal(k_bproj, (dim,), jnp.float32) * 0.05,
    }

    y = attention_forward(x, params, num_heads=num_heads, head_dim=head_dim)
    y = jax.block_until_ready(y)

    y_ref = attention_reference(x, params, num_heads=num_heads, head_dim=head_dim)
    assert y.shape == (B, N, dim)
    # Tolerance relaxed slightly vs 1e-4: softmax denominator uses the approx
    # EUP reciprocal (~1e-3-level relative error on probabilities).
    assert jnp.allclose(y, y_ref, atol=2e-3, rtol=2e-3), "mismatch vs reference"

    print("KERNEL_OK")
</pallas_src>

<mosaic_0001>
module attributes {stable_mosaic.version = 11 : i64} {
  func.func @_qkv_proj_kernel(%arg0: i32, %arg1: memref<16x32xf32, #tpu.memory_space<vmem>>, %arg2: memref<32x96xf32, #tpu.memory_space<vmem>>, %arg3: memref<16x32xf32, #tpu.memory_space<vmem>>, %arg4: memref<16x32xf32, #tpu.memory_space<vmem>>, %arg5: memref<16x32xf32, #tpu.memory_space<vmem>>) attributes {dimension_semantics = [#tpu.dimension_semantics<parallel>], iteration_bounds = array<i64: 1>, scalar_prefetch = 0 : i64, scratch_operands = 0 : i64, tpu.core_type = #tpu.core_type<tc>, window_params = [{transform_indices = @transform_0, window_bounds = array<i64: 16, 32>}, {pipeline_mode = #tpu.pipeline_mode<synchronous>, transform_indices = @transform_1, window_bounds = array<i64: 32, 96>}, {transform_indices = @transform_2, window_bounds = array<i64: 16, 32>}, {transform_indices = @transform_3, window_bounds = array<i64: 16, 32>}, {transform_indices = @transform_4, window_bounds = array<i64: 16, 32>}]} {
    %c0 = arith.constant 0 : index
    %c0_0 = arith.constant 0 : index
    %0 = vector.load %arg1[%c0, %c0_0] : memref<16x32xf32, #tpu.memory_space<vmem>>, vector<16x32xf32>
    %c0_1 = arith.constant 0 : index
    %c0_2 = arith.constant 0 : index
    %1 = vector.load %arg2[%c0_1, %c0_2] : memref<32x96xf32, #tpu.memory_space<vmem>>, vector<32x96xf32>
    %cst = arith.constant dense<0.000000e+00> : vector<16x96xf32>
    %2 = tpu.matmul %0, %1, %cst {dimension_numbers = #tpu.dot_dimension_numbers<[1], [0], [0], [1], [0, 0, 1, 1], [], []>} : vector<16x32xf32>, vector<32x96xf32>, vector<16x96xf32> -> vector<16x96xf32>
    %3 = vector.extract_strided_slice %2 {offsets = [0, 0], sizes = [16, 32], strides = [1, 1]} : vector<16x96xf32> to vector<16x32xf32>
    %c0_3 = arith.constant 0 : index
    %c0_4 = arith.constant 0 : index
    %4 = vector.load %arg3[%c0_3, %c0_4] : memref<16x32xf32, #tpu.memory_space<vmem>>, vector<16x32xf32>
    tpu.vector_store %arg3[%c0_3, %c0_4], %3 {strides = array<i32>} : memref<16x32xf32, #tpu.memory_space<vmem>>, vector<16x32xf32>,
    %5 = vector.extract_strided_slice %2 {offsets = [0, 32], sizes = [16, 32], strides = [1, 1]} : vector<16x96xf32> to vector<16x32xf32>
    %c0_5 = arith.constant 0 : index
    %c0_6 = arith.constant 0 : index
    %6 = vector.load %arg4[%c0_5, %c0_6] : memref<16x32xf32, #tpu.memory_space<vmem>>, vector<16x32xf32>
    tpu.vector_store %arg4[%c0_5, %c0_6], %5 {strides = array<i32>} : memref<16x32xf32, #tpu.memory_space<vmem>>, vector<16x32xf32>,
    %7 = vector.extract_strided_slice %2 {offsets = [0, 64], sizes = [16, 32], strides = [1, 1]} : vector<16x96xf32> to vector<16x32xf32>
    %c0_7 = arith.constant 0 : index
    %c0_8 = arith.constant 0 : index
    %8 = vector.load %arg5[%c0_7, %c0_8] : memref<16x32xf32, #tpu.memory_space<vmem>>, vector<16x32xf32>
    tpu.vector_store %arg5[%c0_7, %c0_8], %7 {strides = array<i32>} : memref<16x32xf32, #tpu.memory_space<vmem>>, vector<16x32xf32>,
    return
  }
  func.func @transform_0(%arg0: i32) -> (i32, i32) {
    %c0_i32 = arith.constant 0 : i32
    %c0_i32_0 = arith.constant 0 : i32
    return %arg0, %c0_i32 : i32, i32
  }
  func.func @transform_1(%arg0: i32) -> (i32, i32) {
    %c0_i32 = arith.constant 0 : i32
    %c0_i32_0 = arith.constant 0 : i32
    %c0_i32_1 = arith.constant 0 : i32
    return %c0_i32, %c0_i32_0 : i32, i32
  }
  func.func @transform_2(%arg0: i32) -> (i32, i32) {
    %c0_i32 = arith.constant 0 : i32
    %c0_i32_0 = arith.constant 0 : i32
    return %arg0, %c0_i32 : i32, i32
  }
  func.func @transform_3(%arg0: i32) -> (i32, i32) {
    %c0_i32 = arith.constant 0 : i32
    %c0_i32_0 = arith.constant 0 : i32
    return %arg0, %c0_i32 : i32, i32
  }
  func.func @transform_4(%arg0: i32) -> (i32, i32) {
    %c0_i32 = arith.constant 0 : i32
    %c0_i32_0 = arith.constant 0 : i32
    return %arg0, %c0_i32 : i32, i32
  }
}

</mosaic_0001>

<llo_original>
// kernel: tpu_custom_call.1
$region0: #{tpu_custom_call.1}
  #allocation0 [shape = 'u32[]', space=smem, size = 0x4, offset = 0x4, fixed_abs, tag = 'smem constant byte address 0x4 - core index']
  #allocation1 [shape = 'u32[144,128]{1,0:T(1,128)}', space=vmem, size = 0x12000, scoped, tag = 'internal scratch']
  %s0 = inlined_call_operand.hbm [shape: f32[16,32], index: 0, kind: input, shape index: {}]
  %s1 = inlined_call_operand.hbm [shape: f32[32,96], index: 1, kind: input, shape index: {}]
  %s2 = inlined_call_operand.hbm [shape: f32[16,32], index: 2, kind: output, shape index: {0}]
  %s3 = inlined_call_operand.hbm [shape: f32[16,32], index: 3, kind: output, shape index: {1}]
  %s4 = inlined_call_operand.hbm [shape: f32[16,32], index: 4, kind: output, shape index: {2}]
  %5 = xla_tuple %s2, %s3, %s4
  %s6 = sld [smem:[#allocation0]]
  $region42: #{tpu_custom_call.1} parent=0
    _
  %s8 = ssub.s32 1, %s6
  %s9 = scalar_select 0, %s8, %s6
  $region1: #{tpu_custom_call.1} parent=0
    #allocation2 [shape = 'u8[8192]{0}', space=vmem, size = 0x2000, scoped, tag = 'input window, operand 0, single buffered']
    #allocation3 [shape = 's32[1]{0}', space=sflag, size = 0x4, scoped, tag = 'scoped memory for tpu_custom_call.1']
    #allocation4 [shape = 's32[1]{0}', space=sflag, size = 0x4, scoped, tag = 'scoped memory for tpu_custom_call.1']
    #allocation5 [shape = 'u8[16384]{0}', space=vmem, size = 0x4000, scoped, tag = 'input window, operand 1, single buffered']
    #allocation6 [shape = 's32[1]{0}', space=sflag, size = 0x4, scoped, tag = 'scoped memory for tpu_custom_call.1']
    #allocation7 [shape = 'u8[8192]{0}', space=vmem, size = 0x2000, scoped, tag = 'output window, operand 0, single buffered']
    #allocation8 [shape = 'u8[8192]{0}', space=vmem, size = 0x2000, scoped, tag = 'output window, operand 1, single buffered']
    #allocation9 [shape = 's32[1]{0}', space=sflag, size = 0x4, scoped, tag = 'scoped memory for tpu_custom_call.1']
    #allocation10 [shape = 'u8[8192]{0}', space=vmem, size = 0x2000, scoped, tag = 'output window, operand 2, single buffered']
    %10 = vsyncpa [#allocation3], 0
    %11 = vsyncpa [#allocation6], 0
    %12 = vsyncpa [#allocation4], 0
    %13 = vsyncpa [#allocation9], 0
    // Predicated region
    $region2: #{tpu_custom_call.1} parent=1 // pred_check
      _
    $region3: #{tpu_custom_call.1} parent=1 // pred_check_branch
      %15 = sbr.rel (0) target = $region5
    $region4: #{tpu_custom_call.1} parent=1 // pred_region
      %s17 = ssub.s32 256, 256
      %18 = vsyncadd [#allocation3], %s17
      %s19 = sshll.u32 [#allocation2], 4
      %s20 = int_to_ptr.vmem [resolvable:$true] %s19
      %25 = dma.hbm_to_vmem [thread:$0]  %s0, 256, %s20, [#allocation3], 128, 128, 8
    $region5: #{tpu_custom_call.1} parent=1 // pred_fallthru
      _
    // Predicated region
    $region6: #{tpu_custom_call.1} parent=1 // pred_check
      _
    $region7: #{tpu_custom_call.1} parent=1 // pred_check_branch
      %27 = sbr.rel (0) target = $region9
    $region8: #{tpu_custom_call.1} parent=1 // pred_region
      %s29 = ssub.s32 512, 512
      %30 = vsyncadd [#allocation6], %s29
      %s31 = sshll.u32 [#allocation5], 4
      %s32 = int_to_ptr.vmem [resolvable:$true] %s31
      %37 = dma.hbm_to_vmem [thread:$0]  %s1, 512, %s32, [#allocation6], 128, 128, 8
    $region9: #{tpu_custom_call.1} parent=1 // pred_fallthru
      _
    // Predicated region
    $region10: #{tpu_custom_call.1} parent=1 // pred_check
      _
    $region11: #{tpu_custom_call.1} parent=1 // pred_check_branch
      %39 = sbr.rel (0) target = $region13
    $region12: #{tpu_custom_call.1} parent=1 // pred_region
      %40 = dma.done [#allocation3], 256
    $region13: #{tpu_custom_call.1} parent=1 // pred_fallthru
      _
    // Predicated region
    $region14: #{tpu_custom_call.1} parent=1 // pred_check
      _
    $region15: #{tpu_custom_call.1} parent=1 // pred_check_branch
      %42 = sbr.rel (0) target = $region17
    $region16: #{tpu_custom_call.1} parent=1 // pred_region
      %43 = dma.done [#allocation6], 512
    $region17: #{tpu_custom_call.1} parent=1 // pred_fallthru
      _
    %v44 = vld [vmem:[#allocation2] sm:$0xff]
    %v45 = vld [vmem:[#allocation2 + $0x8] sm:$0xff]
    %v46 = vld [vmem:[#allocation5] sm:$0xff]
    %v47 = vld [vmem:[#allocation5 + $0x8] sm:$0xff]
    %v48 = vld [vmem:[#allocation5 + $0x10] sm:$0xff]
    %v49 = vld [vmem:[#allocation5 + $0x18] sm:$0xff]
    %vm50 = vcmask 261120
    %v52 = vsel %vm50, %v44, 0
    %v55 = vsel %vm50, %v45, 0
    %57 = vmatprep.subr.mxu0 0.0
    %58 = vmatpush1.msra.mxu0 0.0
    %59 = vmatprep.subr.mxu0 0.0
    %60 = vmatpush1.msra.mxu0 0.0
    %61 = vmatprep.subr.mxu0 0.0
    %62 = vmatpush1.msra.mxu0 0.0
    %63 = vmatprep.subr.mxu0 0.0
    %64 = vmatpush1.msra.mxu0 0.0
    %65 = vmatprep.subr.mxu0 0.0
    %66 = vmatpush1.msra.mxu0 0.0
    %67 = vmatprep.subr.mxu0 0.0
    %68 = vmatpush1.msra.mxu0 0.0
    %69 = vmatprep.subr.mxu0 0.0
    %70 = vmatpush1.msra.mxu0 0.0
    %71 = vmatprep.subr.mxu0 0.0
    %72 = vmatpush1.msra.mxu0 0.0
    %73 = vmatprep.subr.mxu0 0.0
    %74 = vmatpush1.msra.mxu0 0.0
    %75 = vmatprep.subr.mxu0 0.0
    %76 = vmatpush1.msra.mxu0 0.0
    %77 = vmatprep.subr.mxu0 0.0
    %78 = vmatpush1.msra.mxu0 0.0
    %79 = vmatprep.subr.mxu0 0.0
    %80 = vmatpush1.msra.mxu0 0.0
    %81 = vmatprep.subr.mxu0 0.0
    %82 = vmatpush1.msra.mxu0 %v49
    %83 = vmatprep.subr.mxu0 0.0
    %84 = vmatpush1.msra.mxu0 %v48
    %85 = vmatprep.subr.mxu0 0.0
    %86 = vmatpush1.msra.mxu0 %v47
    %87 = vmatprep.subr.mxu0 0.0
    %88 = vmatpush1.msra.mxu0 %v46
    %89 = vmatprep.subr.mxu0 0.0
    %90 = vmatpush2.msra.mxu0 0.0
    %91 = vmatprep.subr.mxu0 0.0
    %92 = vmatpush2.msra.mxu0 0.0
    %93 = vmatprep.subr.mxu0 0.0
    %94 = vmatpush2.msra.mxu0 0.0
    %95 = vmatprep.subr.mxu0 0.0
    %96 = vmatpush2.msra.mxu0 0.0
    %97 = vmatprep.subr.mxu0 0.0
    %98 = vmatpush2.msra.mxu0 0.0
    %99 = vmatprep.subr.mxu0 0.0
    %100 = vmatpush2.msra.mxu0 0.0
    %101 = vmatprep.subr.mxu0 0.0
    %102 = vmatpush2.msra.mxu0 0.0
    %103 = vmatprep.subr.mxu0 0.0
    %104 = vmatpush2.msra.mxu0 0.0
    %105 = vmatprep.subr.mxu0 0.0
    %106 = vmatpush2.msra.mxu0 0.0
    %107 = vmatprep.subr.mxu0 0.0
    %108 = vmatpush2.msra.mxu0 0.0
    %109 = vmatprep.subr.mxu0 0.0
    %110 = vmatpush2.msra.mxu0 0.0
    %111 = vmatprep.subr.mxu0 0.0
    %112 = vmatpush2.msra.mxu0 0.0
    %113 = vmatprep.subr.mxu0 0.0
    %114 = vmatpush2.msra.mxu0 0.0
    %115 = vmatprep.subr.mxu0 0.0
    %116 = vmatpush2.msra.mxu0 0.0
    %117 = vmatprep.subr.mxu0 0.0
    %118 = vmatpush2.msra.mxu0 0.0
    %119 = vmatprep.subr.mxu0 0.0
    %120 = vmatpush2.msra.mxu0 0.0
    %121 = vmatprep.mubr.f32.mxu0 0.0
    %122 = vmatmul.mubr.f32.gmra.mxu0 %v52
    %v123 = vpop.f32.mrf.mxu0
    %v124 = vadd.f32 0.0, %v123
    %v125 = vpop.f32.mrf.mxu0
    %126 = vmatprep.mubr.f32.mxu0 0.0
    %127 = vmatmul.mubr.f32.gmra.mxu0 %v55
    %v128 = vpop.f32.mrf.mxu0
    %v129 = vadd.f32 0.0, %v128
    %v130 = vpop.f32.mrf.mxu0
    %131 = vdwg.mxu0
    %132 = vst.msk [vmem:[#allocation7] sm:$0xff] %vm50, %v124
    %133 = vst.msk [vmem:[#allocation7 + $0x8] sm:$0xff] %vm50, %v129
    %136 = vrot.lane.b32.xlu0 %v124, 96
    %v137 = vpop.permute.xlu0 %136
    %138 = vrot.lane.b32.xlu0 %v129, 96
    %v139 = vpop.permute.xlu0 %138
    %142 = vst.msk [vmem:[#allocation8] sm:$0xff] %vm50, %v137
    %143 = vst.msk [vmem:[#allocation8 + $0x8] sm:$0xff] %vm50, %v139
    %144 = vrot.lane.b32.xlu0 %v124, 64
    %v145 = vpop.permute.xlu0 %144
    %146 = vrot.lane.b32.xlu0 %v129, 64
    %v147 = vpop.permute.xlu0 %146
    %150 = vst.msk [vmem:[#allocation10] sm:$0xff] %vm50, %v145
    %151 = vst.msk [vmem:[#allocation10 + $0x8] sm:$0xff] %vm50, %v147
    // Predicated region
    $region18: #{tpu_custom_call.1} parent=1 // pred_check
      _
    $region19: #{tpu_custom_call.1} parent=1 // pred_check_branch
      %153 = sbr.rel (0) target = $region21
    $region20: #{tpu_custom_call.1} parent=1 // pred_region
      %s155 = ssub.s32 256, 256
      %156 = vsyncadd [#allocation4], %s155
      %s157 = sshll.u32 [#allocation7], 4
      %s158 = int_to_ptr.vmem [resolvable:$true] %s157
      %163 = dma.vmem_to_hbm [thread:$0]  %s158, 256, %s2, [#allocation4], 128, 128, 8
    $region21: #{tpu_custom_call.1} parent=1 // pred_fallthru
      _
    // Predicated region
    $region22: #{tpu_custom_call.1} parent=1 // pred_check
      _
    $region23: #{tpu_custom_call.1} parent=1 // pred_check_branch
      %165 = sbr.rel (0) target = $region25
    $region24: #{tpu_custom_call.1} parent=1 // pred_region
      %s167 = ssub.s32 256, 256
      %168 = vsyncadd [#allocation9], %s167
      %s169 = sshll.u32 [#allocation8], 4
      %s170 = int_to_ptr.vmem [resolvable:$true] %s169
      %175 = dma.vmem_to_hbm [thread:$0]  %s170, 256, %s3, [#allocation9], 128, 128, 8
    $region25: #{tpu_custom_call.1} parent=1 // pred_fallthru
      _
    // Predicated region
    $region26: #{tpu_custom_call.1} parent=1 // pred_check
      _
    $region27: #{tpu_custom_call.1} parent=1 // pred_check_branch
      %177 = sbr.rel (0) target = $region29
    $region28: #{tpu_custom_call.1} parent=1 // pred_region
      %s179 = ssub.s32 256, 256
      %180 = vsyncadd [#allocation9], %s179
      %s181 = sshll.u32 [#allocation10], 4
      %s182 = int_to_ptr.vmem [resolvable:$true] %s181
      %187 = dma.vmem_to_hbm [thread:$0]  %s182, 256, %s4, [#allocation9], 128, 128, 8
    $region29: #{tpu_custom_call.1} parent=1 // pred_fallthru
      _
    // Predicated region
    $region30: #{tpu_custom_call.1} parent=1 // pred_check
      _
    $region31: #{tpu_custom_call.1} parent=1 // pred_check_branch
      %189 = sbr.rel (0) target = $region33
    $region32: #{tpu_custom_call.1} parent=1 // pred_region
      %190 = dma.done [#allocation4], 256
    $region33: #{tpu_custom_call.1} parent=1 // pred_fallthru
      _
    // Predicated region
    $region34: #{tpu_custom_call.1} parent=1 // pred_check
      _
    $region35: #{tpu_custom_call.1} parent=1 // pred_check_branch
      %192 = sbr.rel (0) target = $region37
    $region36: #{tpu_custom_call.1} parent=1 // pred_region
      %193 = dma.done [#allocation9], 256
    $region37: #{tpu_custom_call.1} parent=1 // pred_fallthru
      _
    // Predicated region
    $region38: #{tpu_custom_call.1} parent=1 // pred_check
      _
    $region39: #{tpu_custom_call.1} parent=1 // pred_check_branch
      %195 = sbr.rel (0) target = $region41
    $region40: #{tpu_custom_call.1} parent=1 // pred_region
      %196 = dma.done [#allocation9], 256
    $region41: #{tpu_custom_call.1} parent=1 // pred_fallthru
      _
    %197 = vsyncpa [#allocation3], 1
    %198 = vsyncpa [#allocation6], 1
    %199 = vsyncpa [#allocation4], 1
    %200 = vsyncpa [#allocation9], 1

</llo_original>
